<compile_context>
chip_gen: v6e
topology: v6e:2x2x1
jax: 0.10.0
libtpu: 0.0.40
codegen_flags: <defaults>
</compile_context>

<pallas_src>
import jax
import jax.numpy as jnp
from jax.experimental import pallas as pl
from jax.experimental.pallas import tpu as pltpu


def linear_kernel(x_ref, w_ref, b_ref, o_ref):
    """Fused y = x @ W + b for one row-block.

    x_ref: (TM, H)   input rows
    w_ref: (H, C)    weight, already transposed to (in_features, out_features)
    b_ref: (1, C)    bias
    o_ref: (TM, C)   output logits
    """
    acc = jnp.dot(x_ref[...], w_ref[...], preferred_element_type=jnp.float32)
    o_ref[...] = (acc + b_ref[...]).astype(o_ref.dtype)


def linear_pallas(x, weight, bias, *, block_m=128):
    """Pallas equivalent of torch.nn.Linear: x @ weight.T + bias.

    x:      (..., H)
    weight: (C, H)   -- PyTorch layout (out_features, in_features)
    bias:   (C,)
    returns (..., C)
    """
    orig_shape = x.shape
    H = orig_shape[-1]
    C, H_w = weight.shape
    assert H == H_w, (H, H_w)

    x2 = x.reshape(-1, H)
    M = x2.shape[0]

    # Row-block size: multiple of 8 (sublane), capped at block_m.
    if M >= block_m:
        tm = block_m
    else:
        tm = max(8, ((M + 7) // 8) * 8)
    Mp = ((M + tm - 1) // tm) * tm
    if Mp != M:
        x2 = jnp.pad(x2, ((0, Mp - M), (0, 0)))

    w_t = jnp.transpose(weight)          # (H, C) for a plain row-major matmul
    b2 = bias.reshape(1, C)

    out = pl.pallas_call(
        linear_kernel,
        out_shape=jax.ShapeDtypeStruct((Mp, C), x.dtype),
        grid=(Mp // tm,),
        in_specs=[
            pl.BlockSpec((tm, H), lambda i: (i, 0)),   # row block of x
            pl.BlockSpec((H, C), lambda i: (0, 0)),    # full weight, resident
            pl.BlockSpec((1, C), lambda i: (0, 0)),    # bias, resident
        ],
        out_specs=pl.BlockSpec((tm, C), lambda i: (i, 0)),
        compiler_params=pltpu.CompilerParams(
            dimension_semantics=("parallel",)),
    )(x2, w_t, b2)

    return out[:M].reshape(*orig_shape[:-1], C)


# ---------- pure-JAX reference (correctness check only) ----------
def _ref_forward(x, weight, bias):
    return jnp.dot(x, weight.T) + bias


def init_params(key, hidden_size=256, num_class=80):
    """Deterministic init matching nn.Linear's default uniform bound."""
    kw, kb = jax.random.split(key)
    bound = float(hidden_size) ** -0.5
    weight = jax.random.uniform(kw, (num_class, hidden_size), jnp.float32,
                                -bound, bound)
    bias = jax.random.uniform(kb, (num_class,), jnp.float32, -bound, bound)
    return weight, bias


if __name__ == "__main__":
    key = jax.random.PRNGKey(0)
    pkey, xkey = jax.random.split(key)

    hidden_size, num_class = 256, 80      # module defaults
    batch = 16                            # small example batch

    weight, bias = init_params(pkey, hidden_size, num_class)
    x = jax.random.normal(xkey, (batch, hidden_size), jnp.float32)

    out = jax.block_until_ready(linear_pallas(x, weight, bias))
    ref = _ref_forward(x, weight, bias)

    assert out.shape == (batch, num_class), out.shape
    assert jnp.allclose(out, ref, atol=1e-4, rtol=1e-4), \
        float(jnp.max(jnp.abs(out - ref)))
    print("KERNEL_OK")
</pallas_src>

<mosaic_0001>
module attributes {stable_mosaic.version = 11 : i64} {
  func.func @linear_kernel(%arg0: i32, %arg1: memref<16x256xf32, #tpu.memory_space<vmem>>, %arg2: memref<256x80xf32, #tpu.memory_space<vmem>>, %arg3: memref<1x80xf32, #tpu.memory_space<vmem>>, %arg4: memref<16x80xf32, #tpu.memory_space<vmem>>) attributes {dimension_semantics = [#tpu.dimension_semantics<parallel>], iteration_bounds = array<i64: 1>, scalar_prefetch = 0 : i64, scratch_operands = 0 : i64, tpu.core_type = #tpu.core_type<tc>, window_params = [{transform_indices = @transform_0, window_bounds = array<i64: 16, 256>}, {pipeline_mode = #tpu.pipeline_mode<synchronous>, transform_indices = @transform_1, window_bounds = array<i64: 256, 80>}, {pipeline_mode = #tpu.pipeline_mode<synchronous>, transform_indices = @transform_2, window_bounds = array<i64: 1, 80>}, {transform_indices = @transform_3, window_bounds = array<i64: 16, 80>}]} {
    %c0 = arith.constant 0 : index
    %c0_0 = arith.constant 0 : index
    %0 = vector.load %arg1[%c0, %c0_0] : memref<16x256xf32, #tpu.memory_space<vmem>>, vector<16x256xf32>
    %c0_1 = arith.constant 0 : index
    %c0_2 = arith.constant 0 : index
    %1 = vector.load %arg2[%c0_1, %c0_2] : memref<256x80xf32, #tpu.memory_space<vmem>>, vector<256x80xf32>
    %cst = arith.constant dense<0.000000e+00> : vector<16x80xf32>
    %2 = tpu.matmul %0, %1, %cst {dimension_numbers = #tpu.dot_dimension_numbers<[1], [0], [0], [1], [0, 0, 1, 1], [], []>} : vector<16x256xf32>, vector<256x80xf32>, vector<16x80xf32> -> vector<16x80xf32>
    %c0_3 = arith.constant 0 : index
    %c0_4 = arith.constant 0 : index
    %3 = vector.load %arg3[%c0_3, %c0_4] : memref<1x80xf32, #tpu.memory_space<vmem>>, vector<1x80xf32>
    %4 = vector.broadcast %3 : vector<1x80xf32> to vector<16x80xf32>
    %5 = arith.addf %2, %4 : vector<16x80xf32>
    %c0_5 = arith.constant 0 : index
    %c0_6 = arith.constant 0 : index
    %6 = vector.load %arg4[%c0_5, %c0_6] : memref<16x80xf32, #tpu.memory_space<vmem>>, vector<16x80xf32>
    tpu.vector_store %arg4[%c0_5, %c0_6], %5 {strides = array<i32>} : memref<16x80xf32, #tpu.memory_space<vmem>>, vector<16x80xf32>,
    return
  }
  func.func @transform_0(%arg0: i32) -> (i32, i32) {
    %c0_i32 = arith.constant 0 : i32
    %c0_i32_0 = arith.constant 0 : i32
    return %arg0, %c0_i32 : i32, i32
  }
  func.func @transform_1(%arg0: i32) -> (i32, i32) {
    %c0_i32 = arith.constant 0 : i32
    %c0_i32_0 = arith.constant 0 : i32
    %c0_i32_1 = arith.constant 0 : i32
    return %c0_i32, %c0_i32_0 : i32, i32
  }
  func.func @transform_2(%arg0: i32) -> (i32, i32) {
    %c0_i32 = arith.constant 0 : i32
    %c0_i32_0 = arith.constant 0 : i32
    %c0_i32_1 = arith.constant 0 : i32
    return %c0_i32, %c0_i32_0 : i32, i32
  }
  func.func @transform_3(%arg0: i32) -> (i32, i32) {
    %c0_i32 = arith.constant 0 : i32
    %c0_i32_0 = arith.constant 0 : i32
    return %arg0, %c0_i32 : i32, i32
  }
}

</mosaic_0001>

<llo_original>
// kernel: tpu_custom_call.1
$region0: #{tpu_custom_call.1}
  #allocation0 [shape = 'u32[]', space=smem, size = 0x4, offset = 0x4, fixed_abs, tag = 'smem constant byte address 0x4 - core index']
  #allocation1 [shape = 'u32[144,128]{1,0:T(1,128)}', space=vmem, size = 0x12000, scoped, tag = 'internal scratch']
  %s0 = inlined_call_operand.vmem [shape: f32[16,256], index: 0, kind: input, shape index: {}]
  %s1 = inlined_call_operand.vmem [shape: f32[256,80], index: 1, kind: input, shape index: {}]
  %s2 = inlined_call_operand.vmem [shape: f32[1,80], index: 2, kind: input, shape index: {}]
  %s3 = inlined_call_operand.hbm [shape: f32[16,80], index: 3, kind: output, shape index: {}]
  %s4 = sld [smem:[#allocation0]]
  $region22: #{tpu_custom_call.1} parent=0
    _
  %s6 = ssub.s32 1, %s4
  %s7 = scalar_select 0, %s6, %s4
  $region1: #{tpu_custom_call.1} parent=0
    #allocation2 [shape = 'u8[8192]{0}', space=vmem, size = 0x2000, scoped, tag = 'output window, operand 0, single buffered']
    #allocation3 [shape = 's32[1]{0}', space=sflag, size = 0x4, scoped, tag = 'scoped memory for tpu_custom_call.1']
    %8 = vsyncpa [#allocation3], 0
    // Predicated region
    $region2: #{tpu_custom_call.1} parent=1 // pred_check
      _
    $region3: #{tpu_custom_call.1} parent=1 // pred_check_branch
      %10 = sbr.rel (0) target = $region5
    $region4: #{tpu_custom_call.1} parent=1 // pred_region
      _
    $region5: #{tpu_custom_call.1} parent=1 // pred_fallthru
      _
    // Predicated region
    $region6: #{tpu_custom_call.1} parent=1 // pred_check
      _
    $region7: #{tpu_custom_call.1} parent=1 // pred_check_branch
      %12 = sbr.rel (0) target = $region9
    $region8: #{tpu_custom_call.1} parent=1 // pred_region
      _
    $region9: #{tpu_custom_call.1} parent=1 // pred_fallthru
      _
    // Predicated region
    $region10: #{tpu_custom_call.1} parent=1 // pred_check
      _
    $region11: #{tpu_custom_call.1} parent=1 // pred_check_branch
      %14 = sbr.rel (0) target = $region13
    $region12: #{tpu_custom_call.1} parent=1 // pred_region
      _
    $region13: #{tpu_custom_call.1} parent=1 // pred_fallthru
      _
    %v15 = vld [vmem:[%s0] sm:$0xff]
    %v16 = vld [vmem:[%s0 + $0x8] sm:$0xff]
    %v17 = vld [vmem:[%s0 + $0x10] sm:$0xff]
    %v18 = vld [vmem:[%s0 + $0x18] sm:$0xff]
    %v19 = vld [vmem:[%s1] sm:$0xff]
    %v20 = vld [vmem:[%s1 + $0x8] sm:$0xff]
    %v21 = vld [vmem:[%s1 + $0x10] sm:$0xff]
    %v22 = vld [vmem:[%s1 + $0x18] sm:$0xff]
    %v23 = vld [vmem:[%s1 + $0x20] sm:$0xff]
    %v24 = vld [vmem:[%s1 + $0x28] sm:$0xff]
    %v25 = vld [vmem:[%s1 + $0x30] sm:$0xff]
    %v26 = vld [vmem:[%s1 + $0x38] sm:$0xff]
    %v27 = vld [vmem:[%s1 + $0x40] sm:$0xff]
    %v28 = vld [vmem:[%s1 + $0x48] sm:$0xff]
    %v29 = vld [vmem:[%s1 + $0x50] sm:$0xff]
    %v30 = vld [vmem:[%s1 + $0x58] sm:$0xff]
    %v31 = vld [vmem:[%s1 + $0x60] sm:$0xff]
    %v32 = vld [vmem:[%s1 + $0x68] sm:$0xff]
    %v33 = vld [vmem:[%s1 + $0x70] sm:$0xff]
    %v34 = vld [vmem:[%s1 + $0x78] sm:$0xff]
    %v35 = vld [vmem:[%s1 + $0x80] sm:$0xff]
    %v36 = vld [vmem:[%s1 + $0x88] sm:$0xff]
    %v37 = vld [vmem:[%s1 + $0x90] sm:$0xff]
    %v38 = vld [vmem:[%s1 + $0x98] sm:$0xff]
    %v39 = vld [vmem:[%s1 + $0xa0] sm:$0xff]
    %v40 = vld [vmem:[%s1 + $0xa8] sm:$0xff]
    %v41 = vld [vmem:[%s1 + $0xb0] sm:$0xff]
    %v42 = vld [vmem:[%s1 + $0xb8] sm:$0xff]
    %v43 = vld [vmem:[%s1 + $0xc0] sm:$0xff]
    %v44 = vld [vmem:[%s1 + $0xc8] sm:$0xff]
    %v45 = vld [vmem:[%s1 + $0xd0] sm:$0xff]
    %v46 = vld [vmem:[%s1 + $0xd8] sm:$0xff]
    %v47 = vld [vmem:[%s1 + $0xe0] sm:$0xff]
    %v48 = vld [vmem:[%s1 + $0xe8] sm:$0xff]
    %v49 = vld [vmem:[%s1 + $0xf0] sm:$0xff]
    %v50 = vld [vmem:[%s1 + $0xf8] sm:$0xff]
    %v51 = vld [vmem:[%s2] sm:$0x1]
    %v53 = vlaneseq
    %v54 = vshrl.u32 %v53, 7
    %v55 = vsub.s32 0, %v54
    %v56 = vrot.slane %v51, %v55
    %58 = vmatprep.subr.mxu0 0.0
    %59 = vmatpush1.msra.mxu0 %v34
    %60 = vmatprep.subr.mxu0 0.0
    %61 = vmatpush1.msra.mxu0 %v33
    %62 = vmatprep.subr.mxu0 0.0
    %63 = vmatpush1.msra.mxu0 %v32
    %64 = vmatprep.subr.mxu0 0.0
    %65 = vmatpush1.msra.mxu0 %v31
    %66 = vmatprep.subr.mxu0 0.0
    %67 = vmatpush1.msra.mxu0 %v30
    %68 = vmatprep.subr.mxu0 0.0
    %69 = vmatpush1.msra.mxu0 %v29
    %70 = vmatprep.subr.mxu0 0.0
    %71 = vmatpush1.msra.mxu0 %v28
    %72 = vmatprep.subr.mxu0 0.0
    %73 = vmatpush1.msra.mxu0 %v27
    %74 = vmatprep.subr.mxu0 0.0
    %75 = vmatpush1.msra.mxu0 %v26
    %76 = vmatprep.subr.mxu0 0.0
    %77 = vmatpush1.msra.mxu0 %v25
    %78 = vmatprep.subr.mxu0 0.0
    %79 = vmatpush1.msra.mxu0 %v24
    %80 = vmatprep.subr.mxu0 0.0
    %81 = vmatpush1.msra.mxu0 %v23
    %82 = vmatprep.subr.mxu0 0.0
    %83 = vmatpush1.msra.mxu0 %v22
    %84 = vmatprep.subr.mxu0 0.0
    %85 = vmatpush1.msra.mxu0 %v21
    %86 = vmatprep.subr.mxu0 0.0
    %87 = vmatpush1.msra.mxu0 %v20
    %88 = vmatprep.subr.mxu0 0.0
    %89 = vmatpush1.msra.mxu0 %v19
    %90 = vmatprep.subr.mxu0 0.0
    %91 = vmatpush2.msra.mxu0 %v50
    %92 = vmatprep.subr.mxu0 0.0
    %93 = vmatpush2.msra.mxu0 %v49
    %94 = vmatprep.subr.mxu0 0.0
    %95 = vmatpush2.msra.mxu0 %v48
    %96 = vmatprep.subr.mxu0 0.0
    %97 = vmatpush2.msra.mxu0 %v47
    %98 = vmatprep.subr.mxu0 0.0
    %99 = vmatpush2.msra.mxu0 %v46
    %100 = vmatprep.subr.mxu0 0.0
    %101 = vmatpush2.msra.mxu0 %v45
    %102 = vmatprep.subr.mxu0 0.0
    %103 = vmatpush2.msra.mxu0 %v44
    %104 = vmatprep.subr.mxu0 0.0
    %105 = vmatpush2.msra.mxu0 %v43
    %106 = vmatprep.subr.mxu0 0.0
    %107 = vmatpush2.msra.mxu0 %v42
    %108 = vmatprep.subr.mxu0 0.0
    %109 = vmatpush2.msra.mxu0 %v41
    %110 = vmatprep.subr.mxu0 0.0
    %111 = vmatpush2.msra.mxu0 %v40
    %112 = vmatprep.subr.mxu0 0.0
    %113 = vmatpush2.msra.mxu0 %v39
    %114 = vmatprep.subr.mxu0 0.0
    %115 = vmatpush2.msra.mxu0 %v38
    %116 = vmatprep.subr.mxu0 0.0
    %117 = vmatpush2.msra.mxu0 %v37
    %118 = vmatprep.subr.mxu0 0.0
    %119 = vmatpush2.msra.mxu0 %v36
    %120 = vmatprep.subr.mxu0 0.0
    %121 = vmatpush2.msra.mxu0 %v35
    %122 = vmatprep.mubr.f32.mxu0 %v16
    %123 = vmatmul.mubr.f32.gmra.mxu0 %v15
    %v124 = vpop.f32.mrf.mxu0
    %v125 = vadd.f32 %v56, %v124
    %v126 = vpop.f32.mrf.mxu0
    %127 = vmatprep.mubr.f32.mxu0 %v18
    %128 = vmatmul.mubr.f32.gmra.mxu0 %v17
    %v129 = vpop.f32.mrf.mxu0
    %v130 = vadd.f32 %v56, %v129
    %v131 = vpop.f32.mrf.mxu0
    %132 = vdwg.mxu0
    %vm133 = vcmask 654336
    %134 = vst.msk [vmem:[#allocation2] sm:$0xff] %vm133, %v125
    %135 = vst.msk [vmem:[#allocation2 + $0x8] sm:$0xff] %vm133, %v130
    // Predicated region
    $region14: #{tpu_custom_call.1} parent=1 // pred_check
      _
    $region15: #{tpu_custom_call.1} parent=1 // pred_check_branch
      %137 = sbr.rel (0) target = $region17
    $region16: #{tpu_custom_call.1} parent=1 // pred_region
      %s139 = ssub.s32 256, 256
      %140 = vsyncadd [#allocation3], %s139
      %s141 = sshll.u32 [#allocation2], 4
      %s142 = int_to_ptr.vmem [resolvable:$true] %s141
      %147 = dma.vmem_to_hbm [thread:$0]  %s142, 256, %s3, [#allocation3], 128, 128, 8
    $region17: #{tpu_custom_call.1} parent=1 // pred_fallthru
      _
    // Predicated region
    $region18: #{tpu_custom_call.1} parent=1 // pred_check
      _
    $region19: #{tpu_custom_call.1} parent=1 // pred_check_branch
      %149 = sbr.rel (0) target = $region21
    $region20: #{tpu_custom_call.1} parent=1 // pred_region
      %150 = dma.done [#allocation3], 256
    $region21: #{tpu_custom_call.1} parent=1 // pred_fallthru
      _
    %151 = vsyncpa [#allocation3], 1

</llo_original>
